<compile_context>
chip_gen: v5e
topology: v5e:2x2
jax: 0.10.0
libtpu: 0.0.40
codegen_flags: <defaults>
</compile_context>

<pallas_src>
import functools

import jax
import jax.numpy as jnp
from jax.experimental import pallas as pl
from jax.experimental.pallas import tpu as pltpu

HIDDEN = 200          # logical hidden size (nn.Linear(inSize, 200))
HIDDEN_PAD = 256      # zero-padded hidden (MXU / vreg aligned)
OUT_PAD = 128         # lane-dense output slab width (prob lanes + value lane)
NEG_BIG = -1e30       # mask value for padded softmax lanes
MAX_TB = 512          # max batch-tile rows (sized for v7x 64 MiB VMEM; v5e/v6e fine)


def _round_up(n, m):
    return ((n + m - 1) // m) * m


# ----------------------------------------------------------------------------
# Kernel
# ----------------------------------------------------------------------------
def pi_kernel(x_ref, w1_ref, b_ref, w23_ref, out_ref, *, out_size):
    x = x_ref[...]                                              # [TB, inSize]
    b = b_ref[...]                                              # [2, HIDDEN_PAD]
    b1 = b[0:1, :]                                              # [1, 256]
    b23 = b[1:2, :OUT_PAD]                                      # [1, 128]

    # affine + ReLU (padded hidden cols are exactly 0 after ReLU)
    h = jnp.dot(x, w1_ref[...], preferred_element_type=jnp.float32)
    h = jnp.maximum(h + b1, 0.0)                                # [TB, 256]

    # fused action+value head -> lane-dense [TB, 128] slab:
    #   lanes [0, out_size)   action logits
    #   lane  out_size        state value
    #   lanes (out_size, 128) zeros (zero weights / bias)
    y = jnp.dot(h, w23_ref[...], preferred_element_type=jnp.float32)
    y = y + b23                                                 # [TB, 128]

    col = jax.lax.broadcasted_iota(jnp.int32, y.shape, 1)
    is_prob = col < out_size
    is_val = col == out_size

    # numerically-stable softmax over the real action lanes only
    logits = jnp.where(is_prob, y, NEG_BIG)
    m = jnp.max(logits, axis=-1, keepdims=True)
    e = jnp.exp(logits - m)                                     # padded lanes -> 0
    s = jnp.sum(e, axis=-1, keepdims=True)
    r = pl.reciprocal(s, approx=True)                           # EUP slot
    r = r * (2.0 - s * r)                                       # Newton step, <1e-7 err
    prob = e * r

    out_ref[...] = jnp.where(is_val, y, prob).astype(out_ref.dtype)


# ----------------------------------------------------------------------------
# One-time parameter preparation (hoisted out of the per-call path)
# ----------------------------------------------------------------------------
def prepare_params(w1, b1, w2, b2, w3, b3):
    """Pad / fuse the torch-equivalent params once.  Weights are stored [in, out],
    biases [1, out].  Returns (w1p, b_pack, w23p, out_size)."""
    in_size, hidden = w1.shape
    out_size = w2.shape[1]
    assert hidden == HIDDEN and w3.shape == (hidden, 1)
    assert out_size + 1 <= OUT_PAD

    f32 = jnp.float32
    w1p = jnp.zeros((in_size, HIDDEN_PAD), f32).at[:, :hidden].set(w1)

    w23 = jnp.concatenate([w2, w3], axis=1)                     # [200, out+1]
    b23 = jnp.concatenate([b2, b3], axis=1)                     # [1, out+1]
    w23p = jnp.zeros((HIDDEN_PAD, OUT_PAD), f32).at[:hidden, :out_size + 1].set(w23)

    # pack both bias rows into a single [2, HIDDEN_PAD] VMEM input
    b_pack = jnp.zeros((2, HIDDEN_PAD), f32)
    b_pack = b_pack.at[0, :hidden].set(b1[0])
    b_pack = b_pack.at[1, :out_size + 1].set(b23[0])

    return w1p, b_pack, w23p, out_size


# ----------------------------------------------------------------------------
# Forward
# ----------------------------------------------------------------------------
def pi_forward(x, prepared):
    """x: [B, inSize]; prepared = prepare_params(...) output."""
    w1p, b_pack, w23p, out_size = prepared
    B, in_size = x.shape
    assert w1p.shape[0] == in_size

    # batch tiling: sublane-aligned, capped so double-buffered x/out tiles stay
    # far below v7x's 64 MiB VMEM (TB*(in_size+128)*4*2 bytes).
    b_aligned = _round_up(B, 8)
    if b_aligned <= MAX_TB:
        tb, b_pad = b_aligned, b_aligned
    else:
        tb, b_pad = MAX_TB, _round_up(B, MAX_TB)

    xp = x if b_pad == B else jnp.zeros((b_pad, in_size), x.dtype).at[:B, :].set(x)
    grid = (b_pad // tb,)

    flops = 2 * b_pad * (in_size * HIDDEN_PAD + HIDDEN_PAD * OUT_PAD)
    bytes_accessed = 4 * (b_pad * in_size + in_size * HIDDEN_PAD
                          + 2 * HIDDEN_PAD + HIDDEN_PAD * OUT_PAD
                          + b_pad * OUT_PAD)

    slab = pl.pallas_call(
        functools.partial(pi_kernel, out_size=out_size),
        out_shape=jax.ShapeDtypeStruct((b_pad, OUT_PAD), jnp.float32),
        grid=grid,
        in_specs=[
            pl.BlockSpec((tb, in_size), lambda i: (i, 0)),            # x: tiled over batch
            pl.BlockSpec((in_size, HIDDEN_PAD), lambda i: (0, 0)),    # w1p: resident
            pl.BlockSpec((2, HIDDEN_PAD), lambda i: (0, 0)),          # packed biases: resident
            pl.BlockSpec((HIDDEN_PAD, OUT_PAD), lambda i: (0, 0)),    # w23p: resident
        ],
        out_specs=pl.BlockSpec((tb, OUT_PAD), lambda i: (i, 0)),
        compiler_params=pltpu.CompilerParams(
            dimension_semantics=("parallel",)),
        cost_estimate=pl.CostEstimate(
            flops=flops,
            transcendentals=b_pad * OUT_PAD,
            bytes_accessed=bytes_accessed),
    )(xp, w1p, b_pack, w23p)

    action_prob = slab[:B, :out_size]
    state_value = slab[:B, out_size:out_size + 1]
    return action_prob, state_value


# ----------------------------------------------------------------------------
# Init (mimics nn.Linear default U[-1/sqrt(fan_in), +1/sqrt(fan_in)])
# ----------------------------------------------------------------------------
def init_pi_params(key, in_size, out_size, hidden=HIDDEN):
    def linear_init(k, fan_in, fan_out):
        k_w, k_b = jax.random.split(k)
        bound = 1.0 / jnp.sqrt(jnp.float32(fan_in))
        w = jax.random.uniform(k_w, (fan_in, fan_out), jnp.float32, -bound, bound)
        b = jax.random.uniform(k_b, (1, fan_out), jnp.float32, -bound, bound)
        return w, b

    k1, k2, k3 = jax.random.split(key, 3)
    w1, b1 = linear_init(k1, in_size, hidden)     # affine
    w2, b2 = linear_init(k2, hidden, out_size)    # action_head
    w3, b3 = linear_init(k3, hidden, 1)           # value_head
    return w1, b1, w2, b2, w3, b3


def _reference(x, params):
    w1, b1, w2, b2, w3, b3 = params
    h = jnp.maximum(x @ w1 + b1, 0.0)
    return jax.nn.softmax(h @ w2 + b2, axis=-1), h @ w3 + b3


if __name__ == "__main__":
    key = jax.random.PRNGKey(0)
    k_params, k_x1, k_x2 = jax.random.split(key, 3)

    in_size, out_size = 32, 8
    params = init_pi_params(k_params, in_size, out_size)
    prepared = prepare_params(*params)   # one-time; NOT rebuilt per forward call

    # --- small batch (single grid step, whole-array blocks) ------------------
    B = 8
    x = jax.random.normal(k_x1, (B, in_size), jnp.float32)
    action_prob, state_value = pi_forward(x, prepared)
    jax.block_until_ready((action_prob, state_value))

    prob_ref, val_ref = _reference(x, params)
    assert action_prob.shape == (B, out_size)
    assert state_value.shape == (B, 1)
    assert jnp.allclose(action_prob, prob_ref, atol=1e-5, rtol=1e-5)
    assert jnp.allclose(state_value, val_ref, atol=1e-5, rtol=1e-5)

    # --- larger batch exercising the multi-step grid + padding path ----------
    B2 = 520   # pads to 1024 rows, grid=(2,), weights stay VMEM-resident
    x2 = jax.random.normal(k_x2, (B2, in_size), jnp.float32)
    action_prob2, state_value2 = pi_forward(x2, prepared)
    jax.block_until_ready((action_prob2, state_value2))

    prob_ref2, val_ref2 = _reference(x2, params)
    assert action_prob2.shape == (B2, out_size)
    assert state_value2.shape == (B2, 1)
    assert jnp.allclose(action_prob2, prob_ref2, atol=1e-5, rtol=1e-5)
    assert jnp.allclose(state_value2, val_ref2, atol=1e-5, rtol=1e-5)

    print("KERNEL_OK")
</pallas_src>

<mosaic_0001>
module attributes {stable_mosaic.version = 11 : i64} {
  func.func @pi_kernel(%arg0: i32, %arg1: memref<8x32xf32, #tpu.memory_space<vmem>>, %arg2: memref<32x256xf32, #tpu.memory_space<vmem>>, %arg3: memref<2x256xf32, #tpu.memory_space<vmem>>, %arg4: memref<256x128xf32, #tpu.memory_space<vmem>>, %arg5: memref<8x128xf32, #tpu.memory_space<vmem>>) attributes {dimension_semantics = [#tpu.dimension_semantics<parallel>], iteration_bounds = array<i64: 1>, scalar_prefetch = 0 : i64, scratch_operands = 0 : i64, tpu.core_type = #tpu.core_type<tc>, window_params = [{transform_indices = @transform_0, window_bounds = array<i64: 8, 32>}, {pipeline_mode = #tpu.pipeline_mode<synchronous>, transform_indices = @transform_1, window_bounds = array<i64: 32, 256>}, {pipeline_mode = #tpu.pipeline_mode<synchronous>, transform_indices = @transform_2, window_bounds = array<i64: 2, 256>}, {pipeline_mode = #tpu.pipeline_mode<synchronous>, transform_indices = @transform_3, window_bounds = array<i64: 256, 128>}, {transform_indices = @transform_4, window_bounds = array<i64: 8, 128>}]} {
    %c0 = arith.constant 0 : index
    %c0_0 = arith.constant 0 : index
    %0 = vector.load %arg1[%c0, %c0_0] : memref<8x32xf32, #tpu.memory_space<vmem>>, vector<8x32xf32>
    %c0_1 = arith.constant 0 : index
    %c0_2 = arith.constant 0 : index
    %1 = vector.load %arg3[%c0_1, %c0_2] : memref<2x256xf32, #tpu.memory_space<vmem>>, vector<2x256xf32>
    %2 = vector.extract_strided_slice %1 {offsets = [0, 0], sizes = [1, 256], strides = [1, 1]} : vector<2x256xf32> to vector<1x256xf32>
    %3 = vector.extract_strided_slice %1 {offsets = [1, 0], sizes = [1, 128], strides = [1, 1]} : vector<2x256xf32> to vector<1x128xf32>
    %c0_3 = arith.constant 0 : index
    %c0_4 = arith.constant 0 : index
    %4 = vector.load %arg2[%c0_3, %c0_4] : memref<32x256xf32, #tpu.memory_space<vmem>>, vector<32x256xf32>
    %cst = arith.constant dense<0.000000e+00> : vector<8x256xf32>
    %5 = tpu.matmul %0, %4, %cst {dimension_numbers = #tpu.dot_dimension_numbers<[1], [0], [0], [1], [0, 0, 1, 1], [], []>} : vector<8x32xf32>, vector<32x256xf32>, vector<8x256xf32> -> vector<8x256xf32>
    %6 = vector.broadcast %2 : vector<1x256xf32> to vector<8x256xf32>
    %7 = arith.addf %5, %6 : vector<8x256xf32>
    %cst_5 = arith.constant 0.000000e+00 : f32
    %8 = vector.broadcast %cst_5 : f32 to vector<8x256xf32>
    %9 = arith.maximumf %7, %8 : vector<8x256xf32>
    %c0_6 = arith.constant 0 : index
    %c0_7 = arith.constant 0 : index
    %10 = vector.load %arg4[%c0_6, %c0_7] : memref<256x128xf32, #tpu.memory_space<vmem>>, vector<256x128xf32>
    %cst_8 = arith.constant dense<0.000000e+00> : vector<8x128xf32>
    %11 = tpu.matmul %9, %10, %cst_8 {dimension_numbers = #tpu.dot_dimension_numbers<[1], [0], [0], [1], [0, 0, 1, 1], [], []>} : vector<8x256xf32>, vector<256x128xf32>, vector<8x128xf32> -> vector<8x128xf32>
    %12 = vector.broadcast %3 : vector<1x128xf32> to vector<8x128xf32>
    %13 = arith.addf %11, %12 : vector<8x128xf32>
    %14 = tpu.iota {dimensions = array<i32: 1>} : vector<8x128xi32>
    %c8_i32 = arith.constant 8 : i32
    %15 = vector.broadcast %c8_i32 : i32 to vector<8x128xi32>
    %16 = arith.cmpi slt, %14, %15 : vector<8x128xi32>
    %c8_i32_9 = arith.constant 8 : i32
    %17 = vector.broadcast %c8_i32_9 : i32 to vector<8x128xi32>
    %18 = arith.cmpi eq, %14, %17 : vector<8x128xi32>
    %cst_10 = arith.constant -1.000000e+30 : f32
    %19 = vector.broadcast %cst_10 : f32 to vector<8x128xf32>
    %20 = arith.select %16, %13, %19 : vector<8x128xi1>, vector<8x128xf32>
    %cst_11 = arith.constant dense<0xFF800000> : vector<8xf32>
    %21 = vector.multi_reduction <maximumf>, %20, %cst_11 [1] : vector<8x128xf32> to vector<8xf32>
    %22 = vector.shape_cast %21 : vector<8xf32> to vector<8x1xf32>
    %23 = vector.broadcast %22 : vector<8x1xf32> to vector<8x128xf32>
    %24 = arith.subf %20, %23 : vector<8x128xf32>
    %25 = math.exp %24 : vector<8x128xf32>
    %cst_12 = arith.constant dense<0.000000e+00> : vector<8xf32>
    %26 = vector.multi_reduction <add>, %25, %cst_12 [1] : vector<8x128xf32> to vector<8xf32>
    %27 = vector.shape_cast %26 : vector<8xf32> to vector<8x1xf32>
    %28 = tpu.reciprocal %27 {approx = true} : vector<8x1xf32> -> vector<8x1xf32>
    %29 = arith.mulf %27, %28 : vector<8x1xf32>
    %cst_13 = arith.constant 2.000000e+00 : f32
    %30 = vector.broadcast %cst_13 : f32 to vector<8x1xf32>
    %31 = arith.subf %30, %29 : vector<8x1xf32>
    %32 = arith.mulf %28, %31 : vector<8x1xf32>
    %33 = vector.broadcast %32 : vector<8x1xf32> to vector<8x128xf32>
    %34 = arith.mulf %25, %33 : vector<8x128xf32>
    %35 = arith.select %18, %13, %34 : vector<8x128xi1>, vector<8x128xf32>
    %c0_14 = arith.constant 0 : index
    %c0_15 = arith.constant 0 : index
    %36 = vector.load %arg5[%c0_14, %c0_15] : memref<8x128xf32, #tpu.memory_space<vmem>>, vector<8x128xf32>
    tpu.vector_store %arg5[%c0_14, %c0_15], %35 {strides = array<i32>} : memref<8x128xf32, #tpu.memory_space<vmem>>, vector<8x128xf32>,
    return
  }
  func.func @transform_0(%arg0: i32) -> (i32, i32) {
    %c0_i32 = arith.constant 0 : i32
    %c0_i32_0 = arith.constant 0 : i32
    return %arg0, %c0_i32 : i32, i32
  }
  func.func @transform_1(%arg0: i32) -> (i32, i32) {
    %c0_i32 = arith.constant 0 : i32
    %c0_i32_0 = arith.constant 0 : i32
    %c0_i32_1 = arith.constant 0 : i32
    return %c0_i32, %c0_i32_0 : i32, i32
  }
  func.func @transform_2(%arg0: i32) -> (i32, i32) {
    %c0_i32 = arith.constant 0 : i32
    %c0_i32_0 = arith.constant 0 : i32
    %c0_i32_1 = arith.constant 0 : i32
    return %c0_i32, %c0_i32_0 : i32, i32
  }
  func.func @transform_3(%arg0: i32) -> (i32, i32) {
    %c0_i32 = arith.constant 0 : i32
    %c0_i32_0 = arith.constant 0 : i32
    %c0_i32_1 = arith.constant 0 : i32
    return %c0_i32, %c0_i32_0 : i32, i32
  }
  func.func @transform_4(%arg0: i32) -> (i32, i32) {
    %c0_i32 = arith.constant 0 : i32
    %c0_i32_0 = arith.constant 0 : i32
    return %arg0, %c0_i32 : i32, i32
  }
}

</mosaic_0001>

<llo_original>
// kernel: tpu_custom_call.1
$region0: #{tpu_custom_call.1}
  #allocation0 [shape = 'u32[]', space=smem, size = 0x4, offset = 0x4, fixed_abs, tag = 'smem constant byte address 0x4 - core index']
  #allocation1 [shape = 'u32[72,128]{1,0:T(1,128)}', space=vmem, size = 0x9000, scoped, tag = 'internal scratch']
  %s0 = inlined_call_operand.hbm [shape: f32[8,32], index: 0, kind: input, shape index: {}]
  %s1 = inlined_call_operand.hbm [shape: f32[32,256], index: 1, kind: input, shape index: {}]
  %s2 = inlined_call_operand.hbm [shape: f32[2,256], index: 2, kind: input, shape index: {}]
  %s3 = inlined_call_operand.hbm [shape: f32[256,128], index: 3, kind: input, shape index: {}]
  %s4 = inlined_call_operand.hbm [shape: f32[8,128], index: 4, kind: output, shape index: {}]
  %s5 = sld [smem:[#allocation0]]
  $region42: #{tpu_custom_call.1} parent=0
    _
  %s7 = ssub.s32 1, %s5
  %s8 = scalar_select 0, %s7, %s5
  $region1: #{tpu_custom_call.1} parent=0
    #allocation2 [shape = 'u8[4096]{0}', space=vmem, size = 0x1000, scoped, tag = 'input window, operand 0, single buffered']
    #allocation3 [shape = 's32[1]{0}', space=sflag, size = 0x4, scoped, tag = 'scoped memory for tpu_custom_call.1']
    #allocation4 [shape = 's32[1]{0}', space=sflag, size = 0x4, scoped, tag = 'scoped memory for tpu_custom_call.1']
    #allocation5 [shape = 'u8[32768]{0}', space=vmem, size = 0x8000, scoped, tag = 'input window, operand 1, single buffered']
    #allocation6 [shape = 's32[1]{0}', space=sflag, size = 0x4, scoped, tag = 'scoped memory for tpu_custom_call.1']
    #allocation7 [shape = 'u8[2048]{0}', space=vmem, size = 0x800, scoped, tag = 'input window, operand 2, single buffered']
    #allocation8 [shape = 'u8[131072]{0}', space=vmem, size = 0x20000, scoped, tag = 'input window, operand 3, single buffered']
    #allocation9 [shape = 's32[1]{0}', space=sflag, size = 0x4, scoped, tag = 'scoped memory for tpu_custom_call.1']
    #allocation10 [shape = 'u8[4096]{0}', space=vmem, size = 0x1000, scoped, tag = 'output window, operand 0, single buffered']
    %9 = vsyncpa [#allocation3], 0
    %10 = vsyncpa [#allocation6], 0
    %11 = vsyncpa [#allocation9], 0
    %12 = vsyncpa [#allocation4], 0
    // Predicated region
    $region2: #{tpu_custom_call.1} parent=1 // pred_check
      _
    $region3: #{tpu_custom_call.1} parent=1 // pred_check_branch
      %14 = sbr.rel (0) target = $region5
    $region4: #{tpu_custom_call.1} parent=1 // pred_region
      %16 = vsyncadd [#allocation3], 0
      %s18 = sshll.u32 %s0, 4
      %s19 = int_to_ptr.hbm [resolvable:$true] %s18
      %s20 = sshll.u32 [#allocation2], 4
      %s21 = int_to_ptr.vmem [resolvable:$true] %s20
      %23 = dma.hbm_to_vmem [thread:$0]  %s19, 128, %s21, [#allocation3]
    $region5: #{tpu_custom_call.1} parent=1 // pred_fallthru
      _
    // Predicated region
    $region6: #{tpu_custom_call.1} parent=1 // pred_check
      _
    $region7: #{tpu_custom_call.1} parent=1 // pred_check_branch
      %25 = sbr.rel (0) target = $region9
    $region8: #{tpu_custom_call.1} parent=1 // pred_region
      %27 = vsyncadd [#allocation6], 0
      %s28 = sshll.u32 %s1, 4
      %s29 = int_to_ptr.hbm [resolvable:$true] %s28
      %s30 = sshll.u32 [#allocation5], 4
      %s31 = int_to_ptr.vmem [resolvable:$true] %s30
      %36 = dma.hbm_to_vmem [thread:$0]  %s29, 1024, %s31, [#allocation6], 256, 256, 16
    $region9: #{tpu_custom_call.1} parent=1 // pred_fallthru
      _
    // Predicated region
    $region10: #{tpu_custom_call.1} parent=1 // pred_check
      _
    $region11: #{tpu_custom_call.1} parent=1 // pred_check_branch
      %38 = sbr.rel (0) target = $region13
    $region12: #{tpu_custom_call.1} parent=1 // pred_region
      %40 = vsyncadd [#allocation6], 0
      %s42 = sshll.u32 %s2, 4
      %s43 = int_to_ptr.hbm [resolvable:$true] %s42
      %s44 = sshll.u32 [#allocation7], 4
      %s45 = int_to_ptr.vmem [resolvable:$true] %s44
      %47 = dma.hbm_to_vmem [thread:$0]  %s43, 64, %s45, [#allocation6]
    $region13: #{tpu_custom_call.1} parent=1 // pred_fallthru
      _
    // Predicated region
    $region14: #{tpu_custom_call.1} parent=1 // pred_check
      _
    $region15: #{tpu_custom_call.1} parent=1 // pred_check_branch
      %49 = sbr.rel (0) target = $region17
    $region16: #{tpu_custom_call.1} parent=1 // pred_region
      %51 = vsyncadd [#allocation9], 0
      %s52 = sshll.u32 %s3, 4
      %s53 = int_to_ptr.hbm [resolvable:$true] %s52
      %s54 = sshll.u32 [#allocation8], 4
      %s55 = int_to_ptr.vmem [resolvable:$true] %s54
      %60 = dma.hbm_to_vmem [thread:$0]  %s53, 4096, %s55, [#allocation9], 128, 128, 8
    $region17: #{tpu_custom_call.1} parent=1 // pred_fallthru
      _
    // Predicated region
    $region18: #{tpu_custom_call.1} parent=1 // pred_check
      _
    $region19: #{tpu_custom_call.1} parent=1 // pred_check_branch
      %62 = sbr.rel (0) target = $region21
    $region20: #{tpu_custom_call.1} parent=1 // pred_region
      %64 = dma.done [#allocation3], 128
    $region21: #{tpu_custom_call.1} parent=1 // pred_fallthru
      _
    // Predicated region
    $region22: #{tpu_custom_call.1} parent=1 // pred_check
      _
    $region23: #{tpu_custom_call.1} parent=1 // pred_check_branch
      %66 = sbr.rel (0) target = $region25
    $region24: #{tpu_custom_call.1} parent=1 // pred_region
      %68 = dma.done [#allocation6], 1024
    $region25: #{tpu_custom_call.1} parent=1 // pred_fallthru
      _
    // Predicated region
    $region26: #{tpu_custom_call.1} parent=1 // pred_check
      _
    $region27: #{tpu_custom_call.1} parent=1 // pred_check_branch
      %70 = sbr.rel (0) target = $region29
    $region28: #{tpu_custom_call.1} parent=1 // pred_region
      %72 = dma.done [#allocation6], 64
    $region29: #{tpu_custom_call.1} parent=1 // pred_fallthru
      _
    // Predicated region
    $region30: #{tpu_custom_call.1} parent=1 // pred_check
      _
    $region31: #{tpu_custom_call.1} parent=1 // pred_check_branch
      %74 = sbr.rel (0) target = $region33
    $region32: #{tpu_custom_call.1} parent=1 // pred_region
      %76 = dma.done [#allocation9], 4096
    $region33: #{tpu_custom_call.1} parent=1 // pred_fallthru
      _
    %v77 = vld [vmem:[#allocation2] sm:$0xff]
    %v78 = vld [vmem:[#allocation7] sm:$0xf]
    %v79 = vld [vmem:[#allocation5] sm:$0xff]
    %v80 = vld [vmem:[#allocation5 + $0x8] sm:$0xff]
    %v81 = vld [vmem:[#allocation5 + $0x10] sm:$0xff]
    %v82 = vld [vmem:[#allocation5 + $0x18] sm:$0xff]
    %v83 = vld [vmem:[#allocation5 + $0x20] sm:$0xff]
    %v84 = vld [vmem:[#allocation5 + $0x28] sm:$0xff]
    %v85 = vld [vmem:[#allocation5 + $0x30] sm:$0xff]
    %v86 = vld [vmem:[#allocation5 + $0x38] sm:$0xff]
    %v88 = vperm.slane %v78, 0
    %v89 = vperm.slane %v78, 2
    %v92 = vperm.slane %v88, 0
    %v93 = vperm.slane %v89, 0
    %vm94 = vcmask 261120
    %v96 = vsel %vm94, %v77, 0
    %98 = vmatpush.msra.mxu0 0.0
    %99 = vmatpush.msra.mxu0 0.0
    %100 = vmatpush.msra.mxu0 0.0
    %101 = vmatpush.msra.mxu0 0.0
    %102 = vmatpush.msra.mxu0 0.0
    %103 = vmatpush.msra.mxu0 0.0
    %104 = vmatpush.msra.mxu0 0.0
    %105 = vmatpush.msra.mxu0 0.0
    %106 = vmatpush.msra.mxu0 0.0
    %107 = vmatpush.msra.mxu0 0.0
    %108 = vmatpush.msra.mxu0 0.0
    %109 = vmatpush.msra.mxu0 0.0
    %110 = vmatpush.msra.mxu0 %v85
    %111 = vmatpush.msra.mxu0 %v83
    %112 = vmatpush.msra.mxu0 %v81
    %113 = vmatpush.msra.mxu0 %v79
    %114 = vmatmul.f32.gmra.mxu0 %v96
    %v115 = vpop.f32.mrf.mxu0
    %v116 = vadd.f32 %v92, %v115
    %117 = vdwg.mxu0
    %118 = vmatpush.msra.mxu0 0.0
    %119 = vmatpush.msra.mxu0 0.0
    %120 = vmatpush.msra.mxu0 0.0
    %121 = vmatpush.msra.mxu0 0.0
    %122 = vmatpush.msra.mxu0 0.0
    %123 = vmatpush.msra.mxu0 0.0
    %124 = vmatpush.msra.mxu0 0.0
    %125 = vmatpush.msra.mxu0 0.0
    %126 = vmatpush.msra.mxu0 0.0
    %127 = vmatpush.msra.mxu0 0.0
    %128 = vmatpush.msra.mxu0 0.0
    %129 = vmatpush.msra.mxu0 0.0
    %130 = vmatpush.msra.mxu0 %v86
    %131 = vmatpush.msra.mxu0 %v84
    %132 = vmatpush.msra.mxu0 %v82
    %133 = vmatpush.msra.mxu0 %v80
    %134 = vmatmul.f32.gmra.mxu0 %v96
    %v135 = vpop.f32.mrf.mxu0
    %v136 = vadd.f32 %v93, %v135
    %137 = vdwg.mxu0
    %v138 = vmax.f32 %v116, 0.0
    %v139 = vmax.f32 %v136, 0.0
    %v140 = vld [vmem:[#allocation8] sm:$0xff]
    %v141 = vld [vmem:[#allocation8 + $0x8] sm:$0xff]
    %v142 = vld [vmem:[#allocation8 + $0x10] sm:$0xff]
    %v143 = vld [vmem:[#allocation8 + $0x18] sm:$0xff]
    %v144 = vld [vmem:[#allocation8 + $0x20] sm:$0xff]
    %v145 = vld [vmem:[#allocation8 + $0x28] sm:$0xff]
    %v146 = vld [vmem:[#allocation8 + $0x30] sm:$0xff]
    %v147 = vld [vmem:[#allocation8 + $0x38] sm:$0xff]
    %v148 = vld [vmem:[#allocation8 + $0x40] sm:$0xff]
    %v149 = vld [vmem:[#allocation8 + $0x48] sm:$0xff]
    %v150 = vld [vmem:[#allocation8 + $0x50] sm:$0xff]
    %v151 = vld [vmem:[#allocation8 + $0x58] sm:$0xff]
    %v152 = vld [vmem:[#allocation8 + $0x60] sm:$0xff]
    %v153 = vld [vmem:[#allocation8 + $0x68] sm:$0xff]
    %v154 = vld [vmem:[#allocation8 + $0x70] sm:$0xff]
    %v155 = vld [vmem:[#allocation8 + $0x78] sm:$0xff]
    %v156 = vld [vmem:[#allocation8 + $0x80] sm:$0xff]
    %v157 = vld [vmem:[#allocation8 + $0x88] sm:$0xff]
    %v158 = vld [vmem:[#allocation8 + $0x90] sm:$0xff]
    %v159 = vld [vmem:[#allocation8 + $0x98] sm:$0xff]
    %v160 = vld [vmem:[#allocation8 + $0xa0] sm:$0xff]
    %v161 = vld [vmem:[#allocation8 + $0xa8] sm:$0xff]
    %v162 = vld [vmem:[#allocation8 + $0xb0] sm:$0xff]
    %v163 = vld [vmem:[#allocation8 + $0xb8] sm:$0xff]
    %v164 = vld [vmem:[#allocation8 + $0xc0] sm:$0xff]
    %v165 = vld [vmem:[#allocation8 + $0xc8] sm:$0xff]
    %v166 = vld [vmem:[#allocation8 + $0xd0] sm:$0xff]
    %v167 = vld [vmem:[#allocation8 + $0xd8] sm:$0xff]
    %v168 = vld [vmem:[#allocation8 + $0xe0] sm:$0xff]
    %v169 = vld [vmem:[#allocation8 + $0xe8] sm:$0xff]
    %v170 = vld [vmem:[#allocation8 + $0xf0] sm:$0xff]
    %v171 = vld [vmem:[#allocation8 + $0xf8] sm:$0xff]
    %v172 = vperm.slane %v78, 1
    %173 = vmatpush.msra.mxu0 %v155
    %174 = vmatpush.msra.mxu0 %v154
    %175 = vmatpush.msra.mxu0 %v153
    %176 = vmatpush.msra.mxu0 %v152
    %177 = vmatpush.msra.mxu0 %v151
    %178 = vmatpush.msra.mxu0 %v150
    %179 = vmatpush.msra.mxu0 %v149
    %180 = vmatpush.msra.mxu0 %v148
    %181 = vmatpush.msra.mxu0 %v147
    %182 = vmatpush.msra.mxu0 %v146
    %183 = vmatpush.msra.mxu0 %v145
    %184 = vmatpush.msra.mxu0 %v144
    %185 = vmatpush.msra.mxu0 %v143
    %186 = vmatpush.msra.mxu0 %v142
    %187 = vmatpush.msra.mxu0 %v141
    %188 = vmatpush.msra.mxu0 %v140
    %189 = vmatmul.f32.gmra.mxu0 %v138
    %v190 = vpop.f32.mrf.mxu0
    %v191 = vadd.f32 %v172, %v190
    %192 = vdwg.mxu0
    %193 = vmatpush.msra.mxu0 %v171
    %194 = vmatpush.msra.mxu0 %v170
    %195 = vmatpush.msra.mxu0 %v169
    %196 = vmatpush.msra.mxu0 %v168
    %197 = vmatpush.msra.mxu0 %v167
    %198 = vmatpush.msra.mxu0 %v166
    %199 = vmatpush.msra.mxu0 %v165
    %200 = vmatpush.msra.mxu0 %v164
    %201 = vmatpush.msra.mxu0 %v163
    %202 = vmatpush.msra.mxu0 %v162
    %203 = vmatpush.msra.mxu0 %v161
    %204 = vmatpush.msra.mxu0 %v160
    %205 = vmatpush.msra.mxu0 %v159
    %206 = vmatpush.msra.mxu0 %v158
    %207 = vmatpush.msra.mxu0 %v157
    %208 = vmatpush.msra.mxu0 %v156
    %209 = vmatmul.f32.gmra.mxu0 %v139
    %v210 = vpop.f32.mrf.mxu0
    %v211 = vadd.f32 %v191, %v210
    %212 = vdwg.mxu0
    %v213 = vlaneseq
    %v214 = vand.u32 %v213, 127
    %vm215 = vcmp.lt.s32.totalorder %v214, 8
    %vm216 = vcmp.eq.s32.totalorder %v214, 8
    %v217 = vsel %vm215, %v211, -1e+30
    %218 = vmax.xlane.f32.xlu0 %v217
    %v219 = vpop.xlane.xlu0 %218
    %v220 = vsub.f32 %v217, %v219
    %v221 = vmul.f32 %v220, 1.442695
    %v222 = vpow.pop %v221
    %223 = vadd.xlane.f32.xlu0 %v222
    %v224 = vpop.xlane.xlu0 %223
    %v225 = vrcp.pop %v224
    %v226 = vmul.f32 %v224, %v225
    %v227 = vsub.f32 2.0, %v226
    %v228 = vmul.f32 %v225, %v227
    %v229 = vmul.f32 %v222, %v228
    %v230 = vsel %vm216, %v211, %v229
    %231 = vst [vmem:[#allocation10] sm:$0xff] %v230
    // Predicated region
    $region34: #{tpu_custom_call.1} parent=1 // pred_check
      _
    $region35: #{tpu_custom_call.1} parent=1 // pred_check_branch
      %233 = sbr.rel (0) target = $region37
    $region36: #{tpu_custom_call.1} parent=1 // pred_region
      %235 = vsyncadd [#allocation4], 0
      %s237 = sshll.u32 [#allocation10], 4
      %s238 = int_to_ptr.vmem [resolvable:$true] %s237
      %s239 = sshll.u32 %s4, 4
      %s240 = int_to_ptr.hbm [resolvable:$true] %s239
      %242 = dma.vmem_to_hbm [thread:$0]  %s238, 128, %s240, [#allocation4]
    $region37: #{tpu_custom_call.1} parent=1 // pred_fallthru
      _
    // Predicated region
    $region38: #{tpu_custom_call.1} parent=1 // pred_check
      _
    $region39: #{tpu_custom_call.1} parent=1 // pred_check_branch
      %244 = sbr.rel (0) target = $region41
    $region40: #{tpu_custom_call.1} parent=1 // pred_region
      %246 = dma.done [#allocation4], 128
    $region41: #{tpu_custom_call.1} parent=1 // pred_fallthru
      _
    %247 = vsyncpa [#allocation3], 1
    %248 = vsyncpa [#allocation6], 1
    %249 = vsyncpa [#allocation9], 1
    %250 = vsyncpa [#allocation4], 1

</llo_original>
